<compile_context>
chip_gen: v6e
topology: v6e:2x2x1
jax: 0.10.0
libtpu: 0.0.40
codegen_flags: <defaults>
</compile_context>

<pallas_src>
import math
import functools

import jax
import jax.numpy as jnp
from jax.experimental import pallas as pl
from jax.experimental.pallas import tpu as pltpu


# ---------------------------------------------------------------------------
# Kernel: one (b, h, q-tile, kv-tile) score block
# ---------------------------------------------------------------------------
def _scores_kernel(q_ref, k_ref, a_ref, *, attn_mult, use_bf16):
    # q_ref: (tq, hd), k_ref: (tk, hd), a_ref: (tq, tk)
    q = q_ref[...] * attn_mult          # scale in f32 (cheap: small Q tile)
    k = k_ref[...]
    if use_bf16:
        q = q.astype(jnp.bfloat16)
        k = k.astype(jnp.bfloat16)
    # Contract the last dims directly: K stays in its natural (tk, hd) layout
    # (no per-step XLU transpose); accumulate in f32 on the MXU.
    s = jax.lax.dot_general(
        q, k,
        dimension_numbers=(((1,), (1,)), ((), ())),
        preferred_element_type=jnp.float32,
    )                                    # (tq, tk)
    a_ref[...] = s.astype(a_ref.dtype)


def _pick_tile(n, max_t, align):
    """Largest multiple of `align` <= max_t that divides n (n % align == 0)."""
    if n <= max_t:
        return n
    t = (max_t // align) * align
    while t >= align:
        if n % t == 0:
            return t
        t -= align
    return align  # always divides since align | n


# ---------------------------------------------------------------------------
# Wrapper: AProducerMHA.forward
# ---------------------------------------------------------------------------
def a_producer_mha(q, k, *, n_head, attn_mult,
                   tq_max=512, tk_max=1024, use_bf16_matmul=True):
    """q, k: (B, T, C) float32 -> A: (B, n_head, T, T) float32."""
    B, T, C = q.shape
    assert C % n_head == 0
    hd = C // n_head

    # Pad T up to a multiple of 128 so output tiles are always bounded and
    # lane-dense (fixes the old full-TxT fallback that could blow VMEM).
    T_pad = ((T + 127) // 128) * 128
    if T_pad != T:
        pad = T_pad - T
        q_p = jnp.pad(q, ((0, 0), (0, pad), (0, 0)))
        k_p = jnp.pad(k, ((0, 0), (0, pad), (0, 0)))
    else:
        q_p, k_p = q, k

    tq = _pick_tile(T_pad, tq_max, 8)     # sublane-aligned
    tk = _pick_tile(T_pad, tk_max, 128)   # lane dim of the output tile

    grid = (B, n_head, T_pad // tq, T_pad // tk)
    out_spec = pl.BlockSpec((None, None, tq, tk),
                            lambda b, h, i, j: (b, h, i, j))

    if hd % 128 == 0:
        # Head split expressed purely in the index_map: read the per-head
        # channel slice of the (B, T, C) inputs directly (no transpose op,
        # no extra HBM round-trip).
        q_in, k_in = q_p, k_p
        q_spec = pl.BlockSpec((None, tq, hd), lambda b, h, i, j: (b, i, h))
        k_spec = pl.BlockSpec((None, tk, hd), lambda b, h, i, j: (b, j, h))
    else:
        # Small head_dim (< 128 lanes): pre-split heads in the wrapper
        # (mirrors the PyTorch view + transpose) so block last dims stay full.
        def to_heads(t):
            return t.reshape(B, T_pad, n_head, hd).transpose(0, 2, 1, 3)

        q_in, k_in = to_heads(q_p), to_heads(k_p)
        q_spec = pl.BlockSpec((None, None, tq, hd),
                              lambda b, h, i, j: (b, h, i, 0))
        k_spec = pl.BlockSpec((None, None, tk, hd),
                              lambda b, h, i, j: (b, h, j, 0))

    kern = functools.partial(_scores_kernel, attn_mult=attn_mult,
                             use_bf16=use_bf16_matmul)
    out = pl.pallas_call(
        kern,
        out_shape=jax.ShapeDtypeStruct((B, n_head, T_pad, T_pad), jnp.float32),
        grid=grid,
        in_specs=[q_spec, k_spec],
        out_specs=out_spec,
        compiler_params=pltpu.CompilerParams(
            # Every grid point writes a distinct output block — no
            # accumulation — so all four axes are megacore-shardable.
            dimension_semantics=("parallel", "parallel", "parallel", "parallel"),
            # Footprint at default tiles is ~6-8 MiB double-buffered;
            # 32 MiB is safe on v5e/v6e (128 MiB) and v7x (64 MiB).
            vmem_limit_bytes=32 * 1024 * 1024,
        ),
    )(q_in, k_in)

    if T_pad != T:
        out = out[:, :, :T, :T]
    return out


# ---------------------------------------------------------------------------
# Pure-JAX reference (mirrors the PyTorch module line by line)
# ---------------------------------------------------------------------------
def _reference(q, k, n_head, attn_mult):
    B, T, C = q.shape
    hd = C // n_head
    qh = q.reshape(B, T, n_head, hd).transpose(0, 2, 1, 3)
    kh = k.reshape(B, T, n_head, hd).transpose(0, 2, 1, 3)
    return jnp.einsum("bhqd,bhkd->bhqk", qh, kh) * attn_mult


if __name__ == "__main__":
    key = jax.random.PRNGKey(0)
    k1, k2, k3, k4, k5, k6 = jax.random.split(key, 6)

    # --- Test 1: toy config (wrapper-side head split + T padding path) -----
    B, T, C, n_head = 2, 8, 32, 4
    head_dim = C // n_head
    attn_mult = 1.0 / math.sqrt(head_dim)
    q = jax.random.normal(k1, (B, T, C), dtype=jnp.float32)
    kk = jax.random.normal(k2, (B, T, C), dtype=jnp.float32)

    A = jax.block_until_ready(
        a_producer_mha(q, kk, n_head=n_head, attn_mult=attn_mult))
    ref = _reference(q, kk, n_head, attn_mult)
    assert A.shape == (B, n_head, T, T)
    assert jnp.allclose(A, ref, atol=2e-2, rtol=2e-2), "mismatch (test 1, bf16)"

    # Exact f32 path at tight tolerance on the same inputs.
    A_f32 = jax.block_until_ready(
        a_producer_mha(q, kk, n_head=n_head, attn_mult=attn_mult,
                       use_bf16_matmul=False))
    assert jnp.allclose(A_f32, ref, atol=1e-5, rtol=1e-5), "mismatch (test 1, f32)"

    # --- Test 2: head_dim = 128, T multiple of 128 (index_map head split) ---
    B2, T2, n_head2, hd2 = 1, 256, 2, 128
    C2 = n_head2 * hd2
    attn_mult2 = 1.0 / math.sqrt(hd2)
    q2 = jax.random.normal(k3, (B2, T2, C2), dtype=jnp.float32)
    kk2 = jax.random.normal(k4, (B2, T2, C2), dtype=jnp.float32)

    A2 = jax.block_until_ready(
        a_producer_mha(q2, kk2, n_head=n_head2, attn_mult=attn_mult2))
    ref2 = _reference(q2, kk2, n_head2, attn_mult2)
    assert A2.shape == (B2, n_head2, T2, T2)
    assert jnp.allclose(A2, ref2, atol=2e-2, rtol=2e-2), "mismatch (test 2)"

    # --- Test 3: head_dim = 128, ragged T (index_map head split + padding) --
    B3, T3, n_head3, hd3 = 1, 200, 2, 128
    C3 = n_head3 * hd3
    attn_mult3 = 1.0 / math.sqrt(hd3)
    q3 = jax.random.normal(k5, (B3, T3, C3), dtype=jnp.float32)
    kk3 = jax.random.normal(k6, (B3, T3, C3), dtype=jnp.float32)

    A3 = jax.block_until_ready(
        a_producer_mha(q3, kk3, n_head=n_head3, attn_mult=attn_mult3))
    ref3 = _reference(q3, kk3, n_head3, attn_mult3)
    assert A3.shape == (B3, n_head3, T3, T3)
    assert jnp.allclose(A3, ref3, atol=2e-2, rtol=2e-2), "mismatch (test 3)"

    print("KERNEL_OK")
</pallas_src>

<mosaic_0001>
module attributes {stable_mosaic.version = 11 : i64} {
  func.func @_scores_kernel(%arg0: i32, %arg1: i32, %arg2: i32, %arg3: i32, %arg4: memref<1x1x128x8xf32, #tpu.memory_space<vmem>>, %arg5: memref<1x1x128x8xf32, #tpu.memory_space<vmem>>, %arg6: memref<1x1x128x128xf32, #tpu.memory_space<vmem>>) attributes {dimension_semantics = [#tpu.dimension_semantics<parallel>, #tpu.dimension_semantics<parallel>, #tpu.dimension_semantics<parallel>, #tpu.dimension_semantics<parallel>], iteration_bounds = array<i64: 2, 4, 1, 1>, scalar_prefetch = 0 : i64, scratch_operands = 0 : i64, tpu.core_type = #tpu.core_type<tc>, window_params = [{transform_indices = @transform_0, window_bounds = array<i64: 1, 1, 128, 8>}, {transform_indices = @transform_1, window_bounds = array<i64: 1, 1, 128, 8>}, {transform_indices = @transform_2, window_bounds = array<i64: 1, 1, 128, 128>}]} {
    %c0 = arith.constant 0 : index
    %c0_0 = arith.constant 0 : index
    %c0_1 = arith.constant 0 : index
    %c0_2 = arith.constant 0 : index
    %0 = vector.load %arg4[%c0, %c0_0, %c0_1, %c0_2] : memref<1x1x128x8xf32, #tpu.memory_space<vmem>>, vector<1x1x128x8xf32>
    %1 = vector.shape_cast %0 : vector<1x1x128x8xf32> to vector<128x8xf32>
    %cst = arith.constant 0.353553385 : f32
    %2 = vector.broadcast %cst : f32 to vector<128x8xf32>
    %3 = arith.mulf %1, %2 : vector<128x8xf32>
    %c0_3 = arith.constant 0 : index
    %c0_4 = arith.constant 0 : index
    %c0_5 = arith.constant 0 : index
    %c0_6 = arith.constant 0 : index
    %4 = vector.load %arg5[%c0_3, %c0_4, %c0_5, %c0_6] : memref<1x1x128x8xf32, #tpu.memory_space<vmem>>, vector<1x1x128x8xf32>
    %5 = vector.shape_cast %4 : vector<1x1x128x8xf32> to vector<128x8xf32>
    %6 = arith.truncf %3 : vector<128x8xf32> to vector<128x8xbf16>
    %7 = arith.truncf %5 : vector<128x8xf32> to vector<128x8xbf16>
    %cst_7 = arith.constant dense<0.000000e+00> : vector<128x128xf32>
    %8 = tpu.matmul %6, %7, %cst_7 {dimension_numbers = #tpu.dot_dimension_numbers<[1], [1], [0], [0], [0, 0, 1, 0], [], []>} : vector<128x8xbf16>, vector<128x8xbf16>, vector<128x128xf32> -> vector<128x128xf32>
    %c0_8 = arith.constant 0 : index
    %c0_9 = arith.constant 0 : index
    %c0_10 = arith.constant 0 : index
    %c0_11 = arith.constant 0 : index
    %9 = vector.load %arg6[%c0_8, %c0_9, %c0_10, %c0_11] : memref<1x1x128x128xf32, #tpu.memory_space<vmem>>, vector<1x1x128x128xf32>
    %10 = vector.shape_cast %9 : vector<1x1x128x128xf32> to vector<128x128xf32>
    %11 = vector.shape_cast %8 : vector<128x128xf32> to vector<1x1x128x128xf32>
    tpu.vector_store %arg6[%c0_8, %c0_9, %c0_10, %c0_11], %11 {strides = array<i32>} : memref<1x1x128x128xf32, #tpu.memory_space<vmem>>, vector<1x1x128x128xf32>,
    return
  }
  func.func @transform_0(%arg0: i32, %arg1: i32, %arg2: i32, %arg3: i32) -> (i32, i32, i32, i32) {
    %c0_i32 = arith.constant 0 : i32
    %c0_i32_0 = arith.constant 0 : i32
    return %arg0, %arg1, %arg2, %c0_i32 : i32, i32, i32, i32
  }
  func.func @transform_1(%arg0: i32, %arg1: i32, %arg2: i32, %arg3: i32) -> (i32, i32, i32, i32) {
    %c0_i32 = arith.constant 0 : i32
    %c0_i32_0 = arith.constant 0 : i32
    return %arg0, %arg1, %arg3, %c0_i32 : i32, i32, i32, i32
  }
  func.func @transform_2(%arg0: i32, %arg1: i32, %arg2: i32, %arg3: i32) -> (i32, i32, i32, i32) {
    %c0_i32 = arith.constant 0 : i32
    return %arg0, %arg1, %arg2, %arg3 : i32, i32, i32, i32
  }
}

</mosaic_0001>

<llo_original>
// kernel: tpu_custom_call.1
$region0: #{tpu_custom_call.1}
  #allocation0 [shape = 'u32[]', space=smem, size = 0x4, offset = 0x4, fixed_abs, tag = 'smem constant byte address 0x4 - core index']
  #allocation1 [shape = 'u32[144,128]{1,0:T(1,128)}', space=vmem, size = 0x12000, scoped, tag = 'internal scratch']
  %s0 = inlined_call_operand.vmem [shape: f32[2,4,128,8], index: 0, kind: input, shape index: {}]
  %s1 = inlined_call_operand.vmem [shape: f32[2,4,128,8], index: 1, kind: input, shape index: {}]
  %s2 = inlined_call_operand.hbm [shape: f32[2,4,128,128], index: 2, kind: output, shape index: {}]
  %s3 = sld [smem:[#allocation0]]
  $region41: #{tpu_custom_call.1} parent=0
    _
  %s5 = ssub.s32 1, %s3
  %s6 = scalar_select 0, %s5, %s3
  $region1: #{tpu_custom_call.1} parent=0
    #allocation2 [shape = 'u8[131072]{0}', space=vmem, size = 0x20000, scoped, tag = 'output window, operand 0']
    #allocation3 [shape = 's32[2]{0}', space=sflag, size = 0x8, scoped, tag = 'scoped memory for tpu_custom_call.1']
    %7 = vsyncpa [#allocation3], 0
    %s8 = scalar_lea.sflag [#allocation3], 1
    %9 = vsyncpa %s8, 0
    loop: start=0, step=1, limit=10
    $region2: #{tpu_custom_call.1} parent=1 // loop_pre_header
      _
    $region3: #{tpu_custom_call.1} parent=1 // loop_header
      %s11 = sphi 0, %s15
      %p12 = scmp.ge.s32.totalorder %s11, 10
      %s18 = sphi 0, %s44
      %s19 = sphi 0, %s40
      %s20 = sphi 0, %s36
      %s21 = sphi 0, %s32
      %s22 = sphi 0, %s18
      %s23 = sphi 0, %s19
      %s24 = sphi 0, %s20
      %s25 = sphi 0, %s21
      %s26 = sphi 0, %s22
      %s27 = sphi 0, %s23
      %s28 = sphi 0, %s24
      %s29 = sphi 0, %s25
      %s51 = sphi 0, %s53
      %s54 = sphi 0, %s51
      %s55 = sphi 0, %s54
      %s71 = sphi 0, %s55
      %s81 = sphi 0, %s83
      %s84 = sphi 0, %s81
      %s85 = sphi 0, %s84
      %s101 = sphi 0, %s85
      %s113 = sphi 0, %s115
      %s116 = sphi 0, %s113
      %s117 = sphi 0, %s116
      %s133 = sphi 0, %s117
    $region4: #{tpu_custom_call.1} parent=1 // loop_header_branch
      %14 = sbr.rel (%p12) target = $region8
    $region5: #{tpu_custom_call.1} parent=1 // loop_body
      %s16 = ssub.s32 %s11, 1
      %s17 = ssub.s32 %s11, 2
      %s30 = sadd.s32 1, %s21
      %p31 = scmp.ge.s32.totalorder %s30, 1
      %s32 = scalar_select %p31, 0, %s30
      %s33 = sadd.s32 1, %s20
      %s34 = scalar_select %p31, %s33, %s20
      %p35 = scmp.ge.s32.totalorder %s34, 1
      %s36 = scalar_select %p35, 0, %s34
      %s37 = sadd.s32 1, %s19
      %s38 = scalar_select %p35, %s37, %s19
      %p39 = scmp.ge.s32.totalorder %s38, 4
      %s40 = scalar_select %p39, 0, %s38
      %s41 = sadd.s32 1, %s18
      %s42 = scalar_select %p39, %s41, %s18
      %p43 = scmp.ge.s32.totalorder %s42, 2
      %s44 = scalar_select %p43, 0, %s42
      %s45 = ssub.s32 %s18, %s44
      %s46 = ssub.s32 %s19, %s40
      %s47 = sor.u32 %s45, %s46
      %s48 = ssub.s32 %s20, %s36
      %s49 = sor.u32 %s47, %s48
      %p50 = scmp.eq.s32.totalorder %s49, 0
      %s52 = sadd.s32 %s51, 1
      %s53 = scalar_select %p50, %s51, %s52
      %p56 = pneg %p50
      %p57 = scmp.eq.s32.totalorder %s11, 7
      %p58 = por %p56, %p57
      %p59 = scmp.ne.s32.totalorder %s51, %s54
      %p60 = scmp.eq.s32.totalorder %s11, 0
      %p61 = por %p59, %p60
      %p62 = scmp.ne.s32.totalorder %s51, %s54
      %p63 = scmp.eq.s32.totalorder %s16, 7
      %p64 = por %p62, %p63
      %p65 = scmp.ne.s32.totalorder %s54, %s55
      %p66 = scmp.eq.s32.totalorder %s16, 0
      %p67 = por %p65, %p66
      %p68 = scmp.ne.s32.totalorder %s54, %s55
      %p69 = scmp.eq.s32.totalorder %s17, 7
      %p70 = por %p68, %p69
      %p72 = scmp.ne.s32.totalorder %s55, %s71
      %p73 = scmp.eq.s32.totalorder %s17, 0
      %p74 = por %p72, %p73
      %s75 = ssub.s32 %s18, %s44
      %s76 = ssub.s32 %s19, %s40
      %s77 = sor.u32 %s75, %s76
      %s78 = ssub.s32 %s21, %s32
      %s79 = sor.u32 %s77, %s78
      %p80 = scmp.eq.s32.totalorder %s79, 0
      %s82 = sadd.s32 %s81, 1
      %s83 = scalar_select %p80, %s81, %s82
      %p86 = pneg %p80
      %p87 = scmp.eq.s32.totalorder %s11, 7
      %p88 = por %p86, %p87
      %p89 = scmp.ne.s32.totalorder %s81, %s84
      %p90 = scmp.eq.s32.totalorder %s11, 0
      %p91 = por %p89, %p90
      %p92 = scmp.ne.s32.totalorder %s81, %s84
      %p93 = scmp.eq.s32.totalorder %s16, 7
      %p94 = por %p92, %p93
      %p95 = scmp.ne.s32.totalorder %s84, %s85
      %p96 = scmp.eq.s32.totalorder %s16, 0
      %p97 = por %p95, %p96
      %p98 = scmp.ne.s32.totalorder %s84, %s85
      %p99 = scmp.eq.s32.totalorder %s17, 7
      %p100 = por %p98, %p99
      %p102 = scmp.ne.s32.totalorder %s85, %s101
      %p103 = scmp.eq.s32.totalorder %s17, 0
      %p104 = por %p102, %p103
      %s105 = ssub.s32 %s18, %s44
      %s106 = ssub.s32 %s19, %s40
      %s107 = sor.u32 %s105, %s106
      %s108 = ssub.s32 %s20, %s36
      %s109 = sor.u32 %s107, %s108
      %s110 = ssub.s32 %s21, %s32
      %s111 = sor.u32 %s109, %s110
      %p112 = scmp.eq.s32.totalorder %s111, 0
      %s114 = sadd.s32 %s113, 1
      %s115 = scalar_select %p112, %s113, %s114
      %p118 = pneg %p112
      %p119 = scmp.eq.s32.totalorder %s11, 7
      %p120 = por %p118, %p119
      %p121 = scmp.ne.s32.totalorder %s113, %s116
      %p122 = scmp.eq.s32.totalorder %s11, 0
      %p123 = por %p121, %p122
      %p124 = scmp.ne.s32.totalorder %s113, %s116
      %p125 = scmp.eq.s32.totalorder %s16, 7
      %p126 = por %p124, %p125
      %p127 = scmp.ne.s32.totalorder %s116, %s117
      %p128 = scmp.eq.s32.totalorder %s16, 0
      %p129 = por %p127, %p128
      %p130 = scmp.ne.s32.totalorder %s116, %s117
      %p131 = scmp.eq.s32.totalorder %s17, 7
      %p132 = por %p130, %p131
      %p134 = scmp.ne.s32.totalorder %s117, %s133
      %p135 = scmp.eq.s32.totalorder %s17, 0
      %p136 = por %p134, %p135
      %p137 = scmp.le.s32.totalorder 1, %s11
      %p138 = scmp.lt.s32.totalorder %s11, 9
      %p139 = pnand %p137, %p138
      %p140 = pneg %p139
      // Predicated region
      $region9: #{tpu_custom_call.1} parent=5 // pred_check
        _
      $region10: #{tpu_custom_call.1} parent=5 // pred_check_branch
        %142 = sbr.rel (%p139) target = $region12
      $region11: #{tpu_custom_call.1} parent=5 // pred_region
        %s143 = ssub.s32 %s11, 1
      $region12: #{tpu_custom_call.1} parent=5 // pred_fallthru
        _
      %p144 = scmp.lt.s32.totalorder %s11, 8
      // Predicated region
      $region13: #{tpu_custom_call.1} parent=5 // pred_check
        %p145 = pneg %p144
      $region14: #{tpu_custom_call.1} parent=5 // pred_check_branch
        %147 = sbr.rel (%p145) target = $region16
      $region15: #{tpu_custom_call.1} parent=5 // pred_region
        // Predicated region
        $region17: #{tpu_custom_call.1} parent=15 // pred_check
          %p148 = pneg %p61
        $region18: #{tpu_custom_call.1} parent=15 // pred_check_branch
          %150 = sbr.rel (%p148) target = $region20
        $region19: #{tpu_custom_call.1} parent=15 // pred_region
          %s151 = smul.u32 16, %s20
          %p152 = scmp.lt.s32.totalorder %s18, 1
          %s153 = scalar_select %p152, %s18, 1
          %p154 = scmp.lt.s32.totalorder %s19, 3
          %s155 = scalar_select %p154, %s19, 3
          %p156 = scmp.lt.s32.totalorder %s151, 15
          %s157 = scalar_select %p156, %s151, 15
          %s158 = smul.addr %s155, 16
          %s159 = sadd.s32 %s157, %s158
          %s160 = smul.addr %s153, 64
          %s161 = sadd.s32 %s159, %s160
          %s162 = smul.addr %s161, 8
          %s163 = scalar_lea.vmem %s0, %s162
          %s164 = smul.u32 16, %s20
        $region20: #{tpu_custom_call.1} parent=15 // pred_fallthru
          _
        // Predicated region
        $region21: #{tpu_custom_call.1} parent=15 // pred_check
          %p165 = pneg %p91
        $region22: #{tpu_custom_call.1} parent=15 // pred_check_branch
          %167 = sbr.rel (%p165) target = $region24
        $region23: #{tpu_custom_call.1} parent=15 // pred_region
          %s168 = smul.u32 16, %s21
          %p169 = scmp.lt.s32.totalorder %s18, 1
          %s170 = scalar_select %p169, %s18, 1
          %p171 = scmp.lt.s32.totalorder %s19, 3
          %s172 = scalar_select %p171, %s19, 3
          %p173 = scmp.lt.s32.totalorder %s168, 15
          %s174 = scalar_select %p173, %s168, 15
          %s175 = smul.addr %s172, 16
          %s176 = sadd.s32 %s174, %s175
          %s177 = smul.addr %s170, 64
          %s178 = sadd.s32 %s176, %s177
          %s179 = smul.addr %s178, 8
          %s180 = scalar_lea.vmem %s1, %s179
          %s181 = smul.u32 16, %s21
        $region24: #{tpu_custom_call.1} parent=15 // pred_fallthru
          _
      $region16: #{tpu_custom_call.1} parent=5 // pred_fallthru
        _
      %p182 = scmp.le.s32.totalorder 1, %s11
      %p183 = scmp.lt.s32.totalorder %s11, 9
      %p184 = pnand %p182, %p183
      %p185 = pneg %p184
      // Predicated region
      $region25: #{tpu_custom_call.1} parent=5 // pred_check
        _
      $region26: #{tpu_custom_call.1} parent=5 // pred_check_branch
        %187 = sbr.rel (%p184) target = $region28
      $region27: #{tpu_custom_call.1} parent=5 // pred_region
        %s188 = ssub.s32 %s11, 1
        %s189 = smul.u32 16, %s24
        %p190 = scmp.lt.s32.totalorder %s22, 1
        %s191 = scalar_select %p190, %s22, 1
        %p192 = scmp.lt.s32.totalorder %s23, 3
        %s193 = scalar_select %p192, %s23, 3
        %p194 = scmp.lt.s32.totalorder %s189, 15
        %s195 = scalar_select %p194, %s189, 15
        %s196 = smul.addr %s193, 16
        %s197 = sadd.s32 %s195, %s196
        %s198 = smul.addr %s191, 64
        %s199 = sadd.s32 %s197, %s198
        %s200 = smul.addr %s199, 8
        %s201 = scalar_lea.vmem %s0, %s200
        %p202 = pneg %p67
        %p203 = pneg %p64
        %s204 = smul.u32 16, %s25
        %p205 = scmp.lt.s32.totalorder %s22, 1
        %s206 = scalar_select %p205, %s22, 1
        %p207 = scmp.lt.s32.totalorder %s23, 3
        %s208 = scalar_select %p207, %s23, 3
        %p209 = scmp.lt.s32.totalorder %s204, 15
        %s210 = scalar_select %p209, %s204, 15
        %s211 = smul.addr %s208, 16
        %s212 = sadd.s32 %s210, %s211
        %s213 = smul.addr %s206, 64
        %s214 = sadd.s32 %s212, %s213
        %s215 = smul.addr %s214, 8
        %s216 = scalar_lea.vmem %s1, %s215
        %p217 = pneg %p97
        %p218 = pneg %p94
        %p219 = pneg %p129
        %p220 = pneg %p126
        %s221 = sand.u32 %s116, 1
        %s222 = scalar_lea.sflag [#allocation3], %s221
        %s223 = sand.u32 %s116, 1
        %s224 = smul.addr %s223, 128
        %s225 = scalar_lea.vmem [#allocation2], %s224
        %s226 = smul.u32 16, %s24
        %p227 = scmp.lt.s32.totalorder %s22, 1
        %s228 = scalar_select %p227, %s22, 1
        %p229 = scmp.lt.s32.totalorder %s23, 3
        %s230 = scalar_select %p229, %s23, 3
        %p231 = scmp.lt.s32.totalorder %s226, 15
        %s232 = scalar_select %p231, %s226, 15
        %s233 = smul.addr %s230, 16
        %s234 = sadd.s32 %s232, %s233
        %s235 = smul.addr %s228, 64
        %s236 = sadd.s32 %s234, %s235
        %s237 = smul.addr %s236, 8
        %s238 = scalar_lea.vmem %s0, %s237
        %s239 = smul.u32 16, %s24
        %s240 = smul.u32 16, %s25
        %p241 = scmp.lt.s32.totalorder %s22, 1
        %s242 = scalar_select %p241, %s22, 1
        %p243 = scmp.lt.s32.totalorder %s23, 3
        %s244 = scalar_select %p243, %s23, 3
        %p245 = scmp.lt.s32.totalorder %s240, 15
        %s246 = scalar_select %p245, %s240, 15
        %s247 = smul.addr %s244, 16
        %s248 = sadd.s32 %s246, %s247
        %s249 = smul.addr %s242, 64
        %s250 = sadd.s32 %s248, %s249
        %s251 = smul.addr %s250, 8
        %s252 = scalar_lea.vmem %s1, %s251
        %s253 = smul.u32 16, %s25
        %s254 = smul.u32 16, %s24
        %v256 = vld [vmem:[%s238] sm:$0xff]
        %v257 = vld [vmem:[%s238 + $0x8] sm:$0xff]
        %v258 = vld [vmem:[%s238 + $0x10] sm:$0xff]
        %v259 = vld [vmem:[%s238 + $0x18] sm:$0xff]
        %v260 = vld [vmem:[%s238 + $0x20] sm:$0xff]
        %v261 = vld [vmem:[%s238 + $0x28] sm:$0xff]
        %v262 = vld [vmem:[%s238 + $0x30] sm:$0xff]
        %v263 = vld [vmem:[%s238 + $0x38] sm:$0xff]
        %v264 = vld [vmem:[%s238 + $0x40] sm:$0xff]
        %v265 = vld [vmem:[%s238 + $0x48] sm:$0xff]
        %v266 = vld [vmem:[%s238 + $0x50] sm:$0xff]
        %v267 = vld [vmem:[%s238 + $0x58] sm:$0xff]
        %v268 = vld [vmem:[%s238 + $0x60] sm:$0xff]
        %v269 = vld [vmem:[%s238 + $0x68] sm:$0xff]
        %v270 = vld [vmem:[%s238 + $0x70] sm:$0xff]
        %v271 = vld [vmem:[%s238 + $0x78] sm:$0xff]
        %v272 = vmul.f32 %v256, 0.35355338
        %v273 = vmul.f32 %v257, 0.35355338
        %v274 = vmul.f32 %v258, 0.35355338
        %v275 = vmul.f32 %v259, 0.35355338
        %v276 = vmul.f32 %v260, 0.35355338
        %v277 = vmul.f32 %v261, 0.35355338
        %v278 = vmul.f32 %v262, 0.35355338
        %v279 = vmul.f32 %v263, 0.35355338
        %v280 = vmul.f32 %v264, 0.35355338
        %v281 = vmul.f32 %v265, 0.35355338
        %v282 = vmul.f32 %v266, 0.35355338
        %v283 = vmul.f32 %v267, 0.35355338
        %v284 = vmul.f32 %v268, 0.35355338
        %v285 = vmul.f32 %v269, 0.35355338
        %v286 = vmul.f32 %v270, 0.35355338
        %v287 = vmul.f32 %v271, 0.35355338
        %v288 = vld [vmem:[%s252] sm:$0xff]
        %v289 = vld [vmem:[%s252 + $0x8] sm:$0xff]
        %v290 = vld [vmem:[%s252 + $0x10] sm:$0xff]
        %v291 = vld [vmem:[%s252 + $0x18] sm:$0xff]
        %v292 = vld [vmem:[%s252 + $0x20] sm:$0xff]
        %v293 = vld [vmem:[%s252 + $0x28] sm:$0xff]
        %v294 = vld [vmem:[%s252 + $0x30] sm:$0xff]
        %v295 = vld [vmem:[%s252 + $0x38] sm:$0xff]
        %v296 = vld [vmem:[%s252 + $0x40] sm:$0xff]
        %v297 = vld [vmem:[%s252 + $0x48] sm:$0xff]
        %v298 = vld [vmem:[%s252 + $0x50] sm:$0xff]
        %v299 = vld [vmem:[%s252 + $0x58] sm:$0xff]
        %v300 = vld [vmem:[%s252 + $0x60] sm:$0xff]
        %v301 = vld [vmem:[%s252 + $0x68] sm:$0xff]
        %v302 = vld [vmem:[%s252 + $0x70] sm:$0xff]
        %v303 = vld [vmem:[%s252 + $0x78] sm:$0xff]
        %v304 = vpack.c.bf16 %v273, %v272
        %v305 = vpack.c.bf16 %v275, %v274
        %v306 = vpack.c.bf16 %v277, %v276
        %v307 = vpack.c.bf16 %v279, %v278
        %v308 = vpack.c.bf16 %v281, %v280
        %v309 = vpack.c.bf16 %v283, %v282
        %v310 = vpack.c.bf16 %v285, %v284
        %v311 = vpack.c.bf16 %v287, %v286
        %v312 = vpack.c.bf16 %v289, %v288
        %v313 = vpack.c.bf16 %v291, %v290
        %v314 = vpack.c.bf16 %v293, %v292
        %v315 = vpack.c.bf16 %v295, %v294
        %v316 = vpack.c.bf16 %v297, %v296
        %v317 = vpack.c.bf16 %v299, %v298
        %v318 = vpack.c.bf16 %v301, %v300
        %v319 = vpack.c.bf16 %v303, %v302
        %vm320 = vcmask 64512
        %v322 = vsel %vm320, %v304, 0
        %v325 = vsel %vm320, %v305, 0
        %v328 = vsel %vm320, %v306, 0
        %v331 = vsel %vm320, %v307, 0
        %v334 = vsel %vm320, %v308, 0
        %v337 = vsel %vm320, %v309, 0
        %v340 = vsel %vm320, %v310, 0
        %v343 = vsel %vm320, %v311, 0
        %v346 = vsel %vm320, %v312, 0
        %v349 = vsel %vm320, %v313, 0
        %v352 = vsel %vm320, %v314, 0
        %v355 = vsel %vm320, %v315, 0
        %v358 = vsel %vm320, %v316, 0
        %v361 = vsel %vm320, %v317, 0
        %v364 = vsel %vm320, %v318, 0
        %v367 = vsel %vm320, %v319, 0
        %369 = vmatprep.subr.bf16.mxu0 0
        %370 = vmatpush1.bf16.xpose.msra.mxu0 %v367
        %371 = vmatprep.subr.bf16.mxu0 0
        %372 = vmatpush1.bf16.xpose.msra.mxu0 %v364
        %373 = vmatprep.subr.bf16.mxu0 0
        %374 = vmatpush1.bf16.xpose.msra.mxu0 %v361
        %375 = vmatprep.subr.bf16.mxu0 0
        %376 = vmatpush1.bf16.xpose.msra.mxu0 %v358
        %377 = vmatprep.subr.bf16.mxu0 0
        %378 = vmatpush1.bf16.xpose.msra.mxu0 %v355
        %379 = vmatprep.subr.bf16.mxu0 0
        %380 = vmatpush1.bf16.xpose.msra.mxu0 %v352
        %381 = vmatprep.subr.bf16.mxu0 0
        %382 = vmatpush1.bf16.xpose.msra.mxu0 %v349
        %383 = vmatprep.subr.bf16.mxu0 0
        %384 = vmatpush1.bf16.xpose.msra.mxu0 %v346
        %385 = vmatprep.subr.bf16.mxu0 0
        %386 = vmatpush2.bf16.xpose.msra.mxu0 0
        %387 = vmatprep.subr.bf16.mxu0 0
        %388 = vmatpush2.bf16.xpose.msra.mxu0 0
        %389 = vmatprep.subr.bf16.mxu0 0
        %390 = vmatpush2.bf16.xpose.msra.mxu0 0
        %391 = vmatprep.subr.bf16.mxu0 0
        %392 = vmatpush2.bf16.xpose.msra.mxu0 0
        %393 = vmatprep.subr.bf16.mxu0 0
        %394 = vmatpush2.bf16.xpose.msra.mxu0 0
        %395 = vmatprep.subr.bf16.mxu0 0
        %396 = vmatpush2.bf16.xpose.msra.mxu0 0
        %397 = vmatprep.subr.bf16.mxu0 0
        %398 = vmatpush2.bf16.xpose.msra.mxu0 0
        %399 = vmatprep.subr.bf16.mxu0 0
        %400 = vmatpush2.bf16.xpose.msra.mxu0 0
        %401 = vmatprep.mubr.bf16.mxu0 0
        %402 = vmatmul.mubr.bf16.gmra.mxu0 %v322
        %v403 = vpop.f32.mrf.mxu0
        %v404 = vadd.f32 0.0, %v403
        %v405 = vpop.f32.mrf.mxu0
        %v406 = vpop.f32.mrf.mxu0
        %v407 = vadd.f32 0.0, %v406
        %v408 = vpop.f32.mrf.mxu0
        %409 = vmatprep.mubr.bf16.mxu0 0
        %410 = vmatmul.mubr.bf16.gmra.mxu0 %v325
        %v411 = vpop.f32.mrf.mxu0
        %v412 = vadd.f32 0.0, %v411
        %v413 = vpop.f32.mrf.mxu0
        %v414 = vpop.f32.mrf.mxu0
        %v415 = vadd.f32 0.0, %v414
        %v416 = vpop.f32.mrf.mxu0
        %417 = vmatprep.mubr.bf16.mxu0 0
        %418 = vmatmul.mubr.bf16.gmra.mxu0 %v328
        %v419 = vpop.f32.mrf.mxu0
        %v420 = vadd.f32 0.0, %v419
        %v421 = vpop.f32.mrf.mxu0
        %v422 = vpop.f32.mrf.mxu0
        %v423 = vadd.f32 0.0, %v422
        %v424 = vpop.f32.mrf.mxu0
        %425 = vmatprep.mubr.bf16.mxu0 0
        %426 = vmatmul.mubr.bf16.gmra.mxu0 %v331
        %v427 = vpop.f32.mrf.mxu0
        %v428 = vadd.f32 0.0, %v427
        %v429 = vpop.f32.mrf.mxu0
        %v430 = vpop.f32.mrf.mxu0
        %v431 = vadd.f32 0.0, %v430
        %v432 = vpop.f32.mrf.mxu0
        %433 = vmatprep.mubr.bf16.mxu0 0
        %434 = vmatmul.mubr.bf16.gmra.mxu0 %v334
        %v435 = vpop.f32.mrf.mxu0
        %v436 = vadd.f32 0.0, %v435
        %v437 = vpop.f32.mrf.mxu0
        %v438 = vpop.f32.mrf.mxu0
        %v439 = vadd.f32 0.0, %v438
        %v440 = vpop.f32.mrf.mxu0
        %441 = vmatprep.mubr.bf16.mxu0 0
        %442 = vmatmul.mubr.bf16.gmra.mxu0 %v337
        %v443 = vpop.f32.mrf.mxu0
        %v444 = vadd.f32 0.0, %v443
        %v445 = vpop.f32.mrf.mxu0
        %v446 = vpop.f32.mrf.mxu0
        %v447 = vadd.f32 0.0, %v446
        %v448 = vpop.f32.mrf.mxu0
        %449 = vmatprep.mubr.bf16.mxu0 0
        %450 = vmatmul.mubr.bf16.gmra.mxu0 %v340
        %v451 = vpop.f32.mrf.mxu0
        %v452 = vadd.f32 0.0, %v451
        %v453 = vpop.f32.mrf.mxu0
        %v454 = vpop.f32.mrf.mxu0
        %v455 = vadd.f32 0.0, %v454
        %v456 = vpop.f32.mrf.mxu0
        %457 = vmatprep.mubr.bf16.mxu0 0
        %458 = vmatmul.mubr.bf16.gmra.mxu0 %v343
        %v459 = vpop.f32.mrf.mxu0
        %v460 = vadd.f32 0.0, %v459
        %v461 = vpop.f32.mrf.mxu0
        %v462 = vpop.f32.mrf.mxu0
        %v463 = vadd.f32 0.0, %v462
        %v464 = vpop.f32.mrf.mxu0
        %465 = vdwg.mxu0
        %466 = vst [vmem:[%s225] sm:$0xff] %v404
        %467 = vst [vmem:[%s225 + $0x8] sm:$0xff] %v407
        %468 = vst [vmem:[%s225 + $0x10] sm:$0xff] %v412
        %469 = vst [vmem:[%s225 + $0x18] sm:$0xff] %v415
        %470 = vst [vmem:[%s225 + $0x20] sm:$0xff] %v420
        %471 = vst [vmem:[%s225 + $0x28] sm:$0xff] %v423
        %472 = vst [vmem:[%s225 + $0x30] sm:$0xff] %v428
        %473 = vst [vmem:[%s225 + $0x38] sm:$0xff] %v431
        %474 = vst [vmem:[%s225 + $0x40] sm:$0xff] %v436
        %475 = vst [vmem:[%s225 + $0x48] sm:$0xff] %v439
        %476 = vst [vmem:[%s225 + $0x50] sm:$0xff] %v444
        %477 = vst [vmem:[%s225 + $0x58] sm:$0xff] %v447
        %478 = vst [vmem:[%s225 + $0x60] sm:$0xff] %v452
        %479 = vst [vmem:[%s225 + $0x68] sm:$0xff] %v455
        %480 = vst [vmem:[%s225 + $0x70] sm:$0xff] %v460
        %481 = vst [vmem:[%s225 + $0x78] sm:$0xff] %v463
        %s482 = sand.u32 %s116, 1
        %s483 = scalar_lea.sflag [#allocation3], %s482
        %s484 = sand.u32 %s116, 1
        %s485 = smul.addr %s484, 128
        %s486 = scalar_lea.vmem [#allocation2], %s485
        // Predicated region
        $region29: #{tpu_custom_call.1} parent=27 // pred_check
          %p487 = pneg %p126
        $region30: #{tpu_custom_call.1} parent=27 // pred_check_branch
          %489 = sbr.rel (%p487) target = $region32
        $region31: #{tpu_custom_call.1} parent=27 // pred_region
          %s490 = smul.u32 16, %s24
          %s492 = ssub.s32 2048, 2048
          %493 = vsyncadd %s483, %s492
          %s494 = sadd.s32 %s25, %s490
          %s495 = smul.addr %s23, 16
          %s496 = sadd.s32 %s494, %s495
          %s497 = smul.addr %s22, 64
          %s498 = sadd.s32 %s496, %s497
          %s499 = smul.addr %s498, 128
          %s500 = scalar_lea.hbm %s2, %s499
          %s501 = sshll.u32 %s486, 4
          %s502 = int_to_ptr.vmem [resolvable:$true] %s501
          %507 = dma.vmem_to_hbm [thread:$0]  %s502, 2048, %s500, %s483, 128, 128, 8
        $region32: #{tpu_custom_call.1} parent=27 // pred_fallthru
          _
      $region28: #{tpu_custom_call.1} parent=5 // pred_fallthru
        _
      %p508 = scmp.le.s32.totalorder 2, %s11
      // Predicated region
      $region33: #{tpu_custom_call.1} parent=5 // pred_check
        %p509 = pneg %p508
      $region34: #{tpu_custom_call.1} parent=5 // pred_check_branch
        %511 = sbr.rel (%p509) target = $region36
      $region35: #{tpu_custom_call.1} parent=5 // pred_region
        %s512 = ssub.s32 %s11, 2
        // Predicated region
        $region37: #{tpu_custom_call.1} parent=35 // pred_check
          %p513 = pneg %p132
        $region38: #{tpu_custom_call.1} parent=35 // pred_check_branch
          %515 = sbr.rel (%p513) target = $region40
        $region39: #{tpu_custom_call.1} parent=35 // pred_region
          %s516 = sand.u32 %s117, 1
          %s517 = scalar_lea.sflag [#allocation3], %s516
          %s518 = sand.u32 %s117, 1
          %s519 = smul.addr %s518, 128
          %s520 = scalar_lea.vmem [#allocation2], %s519
          %521 = dma.done %s517, 2048
        $region40: #{tpu_custom_call.1} parent=35 // pred_fallthru
          _
      $region36: #{tpu_custom_call.1} parent=5 // pred_fallthru
        _
    $region6: #{tpu_custom_call.1} parent=1 // loop_footer
      %s15 = sadd.s32 1, %s11
    $region7: #{tpu_custom_call.1} parent=1 // loop_footer_branch
      %10 = sbr.rel target = $region3
    $region8: #{tpu_custom_call.1} parent=1 // loop_exit
      _
    %522 = vsyncpa [#allocation3], 1
    %s523 = scalar_lea.sflag [#allocation3], 1
    %524 = vsyncpa %s523, 1

</llo_original>
